<compile_context>
chip_gen: v7x
topology: tpu7x:2x2x1
jax: 0.10.0
libtpu: 0.0.40
codegen_flags: <defaults>
</compile_context>

<pallas_src>
import functools

import jax
import jax.numpy as jnp
from jax import lax
from jax.experimental import pallas as pl
from jax.experimental.pallas import tpu as pltpu


# --------------------------------------------------------------------------
# Kernel
# --------------------------------------------------------------------------
def _mlp_kernel(x_ref, wgu_ref, wd_ref, o_ref, *scratch):
    """One (tm, H) activation row tile x one ti-slice of the weights.

    x_ref:   (tm, H)       activation rows
    wgu_ref: (2*ti, H)     fused weight tile [gate_k ; up_k] (interleaved)
    wd_ref:  (ti, H)       down_proj weight, pre-transposed to (I, H) rows
    o_ref:   (tm, H)       output rows (block index ignores k -> resident)
    scratch: optional (tm, H) f32 accumulator (only for sub-f32 outputs)
    """
    acc_ref = scratch[0] if scratch else o_ref
    k = pl.program_id(1)
    ti = wgu_ref.shape[0] // 2

    @pl.when(k == 0)
    def _():
        acc_ref[...] = jnp.zeros_like(acc_ref)

    x = x_ref[...]
    # Fused gate+up: (tm, H) . (2ti, H)^T -> (tm, 2ti), f32 accumulation.
    gu = lax.dot_general(x, wgu_ref[...], (((1,), (1,)), ((), ())),
                         preferred_element_type=jnp.float32)
    gate = gu[:, :ti]
    up = gu[:, ti:]
    h = (gate * jax.nn.sigmoid(gate)) * up           # SiLU(gate) * up in f32
    # Down-projection slice in native (K, N) orientation:
    # (tm, ti) . (ti, H) -> (tm, H), accumulated in f32.
    acc_ref[...] += lax.dot_general(h.astype(wd_ref.dtype), wd_ref[...],
                                    (((1,), (0,)), ((), ())),
                                    preferred_element_type=jnp.float32)

    if scratch:
        @pl.when(k == pl.num_programs(1) - 1)
        def _():
            o_ref[...] = acc_ref[...].astype(o_ref.dtype)


# --------------------------------------------------------------------------
# Tile / budget selection helpers
# --------------------------------------------------------------------------
def _round_up(a, b):
    return ((a + b - 1) // b) * b


def _pick_tm(m, tm_req):
    """Largest row tile (multiple of 8) <= tm_req with <=~12.5% padded rows."""
    m8 = _round_up(m, 8)
    tm_req = max(8, min(tm_req, m8))
    tm_req -= tm_req % 8
    best, c = 8, 8
    while c <= tm_req:
        pad = _round_up(m, c) - m
        if pad < 8 or pad * 8 <= m:
            best = c
        c *= 2
    pad = _round_up(m, tm_req) - m
    if tm_req > best and (pad < 8 or pad * 8 <= m):
        best = tm_req
    return best


def _pick_ti(i, ti_req):
    """Reduction tile: multiple of 128; I is zero-padded up to a multiple."""
    ti = max(128, min(ti_req, _round_up(i, 128)))
    return ti - ti % 128


def _vmem_capacity_bytes():
    try:
        cap = int(pltpu.get_tpu_info().vmem_capacity_bytes)
        if cap > 0:
            return cap
    except Exception:
        pass
    return 64 << 20  # conservative (v7x-class) fallback


def _default_tiles(vmem_cap):
    """Per-generation defaults: arithmetic intensity over weights == tm."""
    kind = ""
    try:
        kind = jax.devices()[0].device_kind.lower()
    except Exception:
        pass
    if vmem_cap <= (72 << 20):
        # v7x-class: 64 MiB VMEM/TC, ~3.2 TB/s HBM -> tm ~384 is MXU-bound.
        return 384, 256
    if "v6" in kind:
        # v6e: 918 TF/s vs ~1.4 TB/s HBM -> tm ~768 to stop being HBM-bound.
        return 768, 256
    # v5e (197 TF/s) or unknown 128-MiB part: tm=256 is already compute-bound.
    return 256, 256


# --------------------------------------------------------------------------
# Wrapper
# --------------------------------------------------------------------------
@functools.partial(jax.jit,
                   static_argnames=("tm", "ti", "vmem_cap", "compute_dtype"))
def _mlp_pallas_impl(x, w_gate, w_up, w_down, tm, ti, vmem_cap, compute_dtype):
    B, S, H = x.shape
    I = w_gate.shape[0]
    M = B * S

    out_dtype = x.dtype
    cdt = jnp.dtype(compute_dtype) if compute_dtype is not None else jnp.dtype(x.dtype)
    in_isz = cdt.itemsize
    out_isz = jnp.dtype(out_dtype).itemsize
    need_acc = jnp.dtype(out_dtype) != jnp.dtype(jnp.float32)

    tm_eff = _pick_tm(M, tm)
    ti_eff = _pick_ti(I, ti)

    # --- VMEM bookkeeping (incl. double buffers + f32 temporaries) ---------
    def vmem_need(tm_, ti_):
        n = 2 * tm_ * H * in_isz            # x tile (double buffered)
        n += 2 * (2 * ti_) * H * in_isz     # fused gate/up weight tile
        n += 2 * ti_ * H * in_isz           # down-proj weight tile
        n += 2 * tm_ * H * out_isz          # output tile
        if need_acc:
            n += tm_ * H * 4                # f32 accumulator scratch
        n += 3 * tm_ * (2 * ti_) * 4        # compiler f32 temporaries (gu / h)
        return n

    budget = vmem_cap - (8 << 20)
    while vmem_need(tm_eff, ti_eff) > budget and ti_eff > 128:
        ti_eff = max(128, ((ti_eff // 2) // 128) * 128)
    while vmem_need(tm_eff, ti_eff) > budget and tm_eff > 8:
        tm_eff = max(8, ((tm_eff // 2) // 8) * 8)

    m_pad = _round_up(M, tm_eff)
    # Keep the "parallel" row axis >= 2 on 2-TC chips (v7x) so both
    # TensorCores get work; 64 MiB VMEM is the proxy for that generation.
    if vmem_cap <= (72 << 20) and m_pad // tm_eff == 1 and tm_eff % 16 == 0:
        tm_eff //= 2
    m_pad = _round_up(M, tm_eff)
    i_pad = _round_up(I, ti_eff)
    nk = i_pad // ti_eff

    # --- data prep (wrapper-side, one-time per call under jit) -------------
    x2 = x.reshape(M, H).astype(cdt)
    if m_pad != M:
        x2 = jnp.pad(x2, ((0, m_pad - M), (0, 0)))          # zero rows: inert

    wg = w_gate.astype(cdt)
    wu = w_up.astype(cdt)
    wd_t = w_down.T.astype(cdt)                              # (I, H) row slices
    if i_pad != I:
        wg = jnp.pad(wg, ((0, i_pad - I), (0, 0)))           # silu(0)*0 == 0
        wu = jnp.pad(wu, ((0, i_pad - I), (0, 0)))
        wd_t = jnp.pad(wd_t, ((0, i_pad - I), (0, 0)))
    # Interleave per tile so block k of the fused tensor is [gate_k ; up_k].
    w_gu = jnp.concatenate(
        [wg.reshape(nk, ti_eff, H), wu.reshape(nk, ti_eff, H)], axis=1
    ).reshape(2 * i_pad, H)

    grid = (m_pad // tm_eff, nk)

    vmem_limit = int(min(max(vmem_need(tm_eff, ti_eff) + (16 << 20), 32 << 20),
                         vmem_cap - (2 << 20)))

    cost = pl.CostEstimate(
        flops=6 * M * H * I,
        transcendentals=M * I,
        # Weights are re-streamed once per row tile.
        bytes_accessed=int(grid[0] * 3 * i_pad * H * in_isz
                           + 2 * M * H * out_isz),
    )

    scratch_shapes = [pltpu.VMEM((tm_eff, H), jnp.float32)] if need_acc else []

    out = pl.pallas_call(
        _mlp_kernel,
        out_shape=jax.ShapeDtypeStruct((m_pad, H), out_dtype),
        grid_spec=pltpu.PrefetchScalarGridSpec(
            num_scalar_prefetch=0,
            grid=grid,
            in_specs=[
                pl.BlockSpec((tm_eff, H), lambda i, k: (i, 0)),       # x rows
                pl.BlockSpec((2 * ti_eff, H), lambda i, k: (k, 0)),   # [gate;up]
                pl.BlockSpec((ti_eff, H), lambda i, k: (k, 0)),       # down^T
            ],
            out_specs=pl.BlockSpec((tm_eff, H), lambda i, k: (i, 0)),
            scratch_shapes=scratch_shapes,
        ),
        compiler_params=pltpu.CompilerParams(
            dimension_semantics=("parallel", "arbitrary"),
            vmem_limit_bytes=vmem_limit,
        ),
        cost_estimate=cost,
    )(x2, w_gu, wd_t)

    return out[:M].reshape(B, S, H)


def mlp_pallas(x, w_gate, w_up, w_down, tm=None, ti=None, compute_dtype=None):
    """x: [B,S,H]; w_gate/w_up: [I,H]; w_down: [H,I] (PyTorch Linear layout).

    compute_dtype=jnp.bfloat16 casts matmul operands to bf16 (f32 accumulate)
    for ~2x roofline on all generations; default keeps the input dtype.
    """
    vmem_cap = _vmem_capacity_bytes()
    d_tm, d_ti = _default_tiles(vmem_cap)
    tm = d_tm if tm is None else tm
    ti = d_ti if ti is None else ti
    return _mlp_pallas_impl(x, w_gate, w_up, w_down, tm=tm, ti=ti,
                            vmem_cap=vmem_cap, compute_dtype=compute_dtype)


def _init_linear_weight(key, out_features, in_features, dtype=jnp.float32):
    # Matches torch.nn.Linear default init: U(-1/sqrt(in), 1/sqrt(in))
    bound = 1.0 / (in_features ** 0.5)
    return jax.random.uniform(key, (out_features, in_features),
                              minval=-bound, maxval=bound, dtype=dtype)


if __name__ == "__main__":
    key = jax.random.PRNGKey(0)
    k_x, k_g, k_u, k_d = jax.random.split(key, 4)

    batch, seq, hidden, intermediate = 2, 8, 128, 512

    x = jax.random.normal(k_x, (batch, seq, hidden), dtype=jnp.float32)
    w_gate = _init_linear_weight(k_g, intermediate, hidden)   # gate_proj.weight (I, H)
    w_up = _init_linear_weight(k_u, intermediate, hidden)     # up_proj.weight   (I, H)
    w_down = _init_linear_weight(k_d, hidden, intermediate)   # down_proj.weight (H, I)

    # Pure-JAX reference (high-precision matmuls) for correctness check.
    hp = jax.lax.Precision.HIGHEST
    gate = jnp.einsum("bsh,ih->bsi", x, w_gate, precision=hp)
    up = jnp.einsum("bsh,ih->bsi", x, w_up, precision=hp)
    ref = jnp.einsum("bsi,hi->bsh", jax.nn.silu(gate) * up, w_down, precision=hp)

    # (a) small explicit tiles: exercises both grid axes (rows + I reduction).
    out_small = jax.block_until_ready(
        mlp_pallas(x, w_gate, w_up, w_down, tm=8, ti=128))
    # (b) per-chip default tiles: exercises clamping / padding / budget paths.
    out_auto = jax.block_until_ready(mlp_pallas(x, w_gate, w_up, w_down))

    assert out_small.shape == (batch, seq, hidden)
    assert out_auto.shape == (batch, seq, hidden)
    assert jnp.allclose(out_small, ref, atol=2e-3, rtol=2e-3), "mismatch (small tiles)"
    assert jnp.allclose(out_auto, ref, atol=2e-3, rtol=2e-3), "mismatch (auto tiles)"
    print("KERNEL_OK")
</pallas_src>

<mosaic_0001>
module attributes {stable_mosaic.version = 11 : i64} {
  func.func @_mlp_kernel(%arg0: i32, %arg1: i32, %arg2: memref<8x128xf32, #tpu.memory_space<vmem>>, %arg3: memref<256x128xf32, #tpu.memory_space<vmem>>, %arg4: memref<128x128xf32, #tpu.memory_space<vmem>>, %arg5: memref<8x128xf32, #tpu.memory_space<vmem>>) attributes {dimension_semantics = [#tpu.dimension_semantics<parallel>, #tpu.dimension_semantics<arbitrary>], iteration_bounds = array<i64: 2, 4>, scalar_prefetch = 0 : i64, scratch_operands = 0 : i64, tpu.core_type = #tpu.core_type<tc>, window_params = [{transform_indices = @transform_0, window_bounds = array<i64: 8, 128>}, {transform_indices = @transform_1, window_bounds = array<i64: 256, 128>}, {transform_indices = @transform_2, window_bounds = array<i64: 128, 128>}, {transform_indices = @transform_3, window_bounds = array<i64: 8, 128>}]} {
    %c0_i32 = arith.constant 0 : i32
    %0 = arith.cmpi eq, %arg1, %c0_i32 : i32
    %1 = arith.extui %0 : i1 to i32
    %c0_i32_0 = arith.constant 0 : i32
    %2 = arith.cmpi ne, %1, %c0_i32_0 : i32
    scf.if %2 {
      %cst_12 = arith.constant 0.000000e+00 : f32
      %20 = vector.broadcast %cst_12 : f32 to vector<8x128xf32>
      %c0_13 = arith.constant 0 : index
      %c0_14 = arith.constant 0 : index
      %21 = vector.load %arg5[%c0_13, %c0_14] : memref<8x128xf32, #tpu.memory_space<vmem>>, vector<8x128xf32>
      tpu.vector_store %arg5[%c0_13, %c0_14], %20 {strides = array<i32>} : memref<8x128xf32, #tpu.memory_space<vmem>>, vector<8x128xf32>,
    } else {
    }
    %c0 = arith.constant 0 : index
    %c0_1 = arith.constant 0 : index
    %3 = vector.load %arg2[%c0, %c0_1] : memref<8x128xf32, #tpu.memory_space<vmem>>, vector<8x128xf32>
    %c0_2 = arith.constant 0 : index
    %c0_3 = arith.constant 0 : index
    %4 = vector.load %arg3[%c0_2, %c0_3] : memref<256x128xf32, #tpu.memory_space<vmem>>, vector<256x128xf32>
    %cst = arith.constant dense<0.000000e+00> : vector<8x256xf32>
    %5 = tpu.matmul %3, %4, %cst {dimension_numbers = #tpu.dot_dimension_numbers<[1], [1], [0], [0], [0, 0, 1, 0], [], []>} : vector<8x128xf32>, vector<256x128xf32>, vector<8x256xf32> -> vector<8x256xf32>
    %6 = vector.extract_strided_slice %5 {offsets = [0, 0], sizes = [8, 128], strides = [1, 1]} : vector<8x256xf32> to vector<8x128xf32>
    %7 = vector.extract_strided_slice %5 {offsets = [0, 128], sizes = [8, 128], strides = [1, 1]} : vector<8x256xf32> to vector<8x128xf32>
    %8 = arith.negf %6 : vector<8x128xf32>
    %9 = math.exp %8 : vector<8x128xf32>
    %cst_4 = arith.constant 1.000000e+00 : f32
    %10 = vector.broadcast %cst_4 : f32 to vector<8x128xf32>
    %11 = arith.addf %10, %9 : vector<8x128xf32>
    %12 = arith.divf %10, %11 : vector<8x128xf32>
    %13 = arith.mulf %6, %12 : vector<8x128xf32>
    %14 = arith.mulf %13, %7 : vector<8x128xf32>
    %c0_5 = arith.constant 0 : index
    %c0_6 = arith.constant 0 : index
    %15 = vector.load %arg5[%c0_5, %c0_6] : memref<8x128xf32, #tpu.memory_space<vmem>>, vector<8x128xf32>
    %c0_7 = arith.constant 0 : index
    %c0_8 = arith.constant 0 : index
    %16 = vector.load %arg4[%c0_7, %c0_8] : memref<128x128xf32, #tpu.memory_space<vmem>>, vector<128x128xf32>
    %cst_9 = arith.constant dense<0.000000e+00> : vector<8x128xf32>
    %17 = tpu.matmul %14, %16, %cst_9 {dimension_numbers = #tpu.dot_dimension_numbers<[1], [0], [0], [1], [0, 0, 1, 1], [], []>} : vector<8x128xf32>, vector<128x128xf32>, vector<8x128xf32> -> vector<8x128xf32>
    %18 = arith.addf %15, %17 : vector<8x128xf32>
    %c0_10 = arith.constant 0 : index
    %c0_11 = arith.constant 0 : index
    %19 = vector.load %arg5[%c0_10, %c0_11] : memref<8x128xf32, #tpu.memory_space<vmem>>, vector<8x128xf32>
    tpu.vector_store %arg5[%c0_10, %c0_11], %18 {strides = array<i32>} : memref<8x128xf32, #tpu.memory_space<vmem>>, vector<8x128xf32>,
    return
  }
  func.func @transform_0(%arg0: i32, %arg1: i32) -> (i32, i32) {
    %c0_i32 = arith.constant 0 : i32
    %c0_i32_0 = arith.constant 0 : i32
    return %arg0, %c0_i32 : i32, i32
  }
  func.func @transform_1(%arg0: i32, %arg1: i32) -> (i32, i32) {
    %c0_i32 = arith.constant 0 : i32
    %c0_i32_0 = arith.constant 0 : i32
    return %arg1, %c0_i32 : i32, i32
  }
  func.func @transform_2(%arg0: i32, %arg1: i32) -> (i32, i32) {
    %c0_i32 = arith.constant 0 : i32
    %c0_i32_0 = arith.constant 0 : i32
    return %arg1, %c0_i32 : i32, i32
  }
  func.func @transform_3(%arg0: i32, %arg1: i32) -> (i32, i32) {
    %c0_i32 = arith.constant 0 : i32
    %c0_i32_0 = arith.constant 0 : i32
    return %arg0, %c0_i32 : i32, i32
  }
}

</mosaic_0001>

<llo_original>
// kernel: _mlp_pallas_impl.1
$region0: #{_mlp_pallas_impl.1}
  #allocation0 [shape = 'u32[]', space=smem, size = 0x4, offset = 0x4, fixed_abs, tag = 'smem constant byte address 0x4 - core index']
  #allocation1 [shape = 'u32[144,128]{1,0:T(1,128)}', space=vmem, size = 0x12000, scoped, tag = 'internal scratch']
  %s0 = inlined_call_operand.vmem [shape: f32[16,128], index: 0, kind: input, shape index: {}]
  %s1 = inlined_call_operand.vmem [shape: f32[1024,128], index: 1, kind: input, shape index: {}]
  %s2 = inlined_call_operand.vmem [shape: f32[512,128], index: 2, kind: input, shape index: {}]
  %s3 = inlined_call_operand.hbm [shape: f32[16,128], index: 3, kind: output, shape index: {}]
  %s4 = sld [smem:[#allocation0]]
  $region49: #{_mlp_pallas_impl.1} parent=0
    _
  %s6 = ssub.s32 1, %s4
  %s7 = scalar_select 0, %s6, %s4
  $region1: #{_mlp_pallas_impl.1} parent=0
    #allocation2 [shape = 'u8[8192]{0}', space=vmem, size = 0x2000, scoped, tag = 'output window, operand 0']
    #allocation3 [shape = 's32[2]{0}', space=sflag, size = 0x8, scoped, tag = 'scoped memory for _mlp_pallas_impl.1']
    %8 = vsyncpa [#allocation3], 0
    %s9 = scalar_lea.sflag [#allocation3], 1
    %10 = vsyncpa %s9, 0
    loop: start=0, step=1, limit=10
    $region2: #{_mlp_pallas_impl.1} parent=1 // loop_pre_header
      _
    $region3: #{_mlp_pallas_impl.1} parent=1 // loop_header
      %s12 = sphi 0, %s16
      %p13 = scmp.ge.s32.totalorder %s12, 10
      %s19 = sphi 0, %s31
      %s20 = sphi 0, %s27
      %s21 = sphi 0, %s19
      %s22 = sphi 0, %s20
      %s23 = sphi 0, %s21
      %s24 = sphi 0, %s22
      %s34 = sphi 0, %s36
      %s37 = sphi 0, %s34
      %s38 = sphi 0, %s37
      %s54 = sphi 0, %s38
      %s60 = sphi 0, %s62
      %s63 = sphi 0, %s60
      %s64 = sphi 0, %s63
      %s80 = sphi 0, %s64
      %s86 = sphi 0, %s88
      %s89 = sphi 0, %s86
      %s90 = sphi 0, %s89
      %s106 = sphi 0, %s90
      %s112 = sphi 0, %s114
      %s115 = sphi 0, %s112
      %s116 = sphi 0, %s115
      %s132 = sphi 0, %s116
    $region4: #{_mlp_pallas_impl.1} parent=1 // loop_header_branch
      %15 = sbr.rel (%p13) target = $region8
    $region5: #{_mlp_pallas_impl.1} parent=1 // loop_body
      %s17 = ssub.s32 %s12, 1
      %s18 = ssub.s32 %s12, 2
      %s25 = sadd.s32 1, %s20
      %p26 = scmp.ge.s32.totalorder %s25, 4
      %s27 = scalar_select %p26, 0, %s25
      %s28 = sadd.s32 1, %s19
      %s29 = scalar_select %p26, %s28, %s19
      %p30 = scmp.ge.s32.totalorder %s29, 2
      %s31 = scalar_select %p30, 0, %s29
      %s32 = ssub.s32 %s19, %s31
      %p33 = scmp.eq.s32.totalorder %s32, 0
      %s35 = sadd.s32 %s34, 1
      %s36 = scalar_select %p33, %s34, %s35
      %p39 = pneg %p33
      %p40 = scmp.eq.s32.totalorder %s12, 7
      %p41 = por %p39, %p40
      %p42 = scmp.ne.s32.totalorder %s34, %s37
      %p43 = scmp.eq.s32.totalorder %s12, 0
      %p44 = por %p42, %p43
      %p45 = scmp.ne.s32.totalorder %s34, %s37
      %p46 = scmp.eq.s32.totalorder %s17, 7
      %p47 = por %p45, %p46
      %p48 = scmp.ne.s32.totalorder %s37, %s38
      %p49 = scmp.eq.s32.totalorder %s17, 0
      %p50 = por %p48, %p49
      %p51 = scmp.ne.s32.totalorder %s37, %s38
      %p52 = scmp.eq.s32.totalorder %s18, 7
      %p53 = por %p51, %p52
      %p55 = scmp.ne.s32.totalorder %s38, %s54
      %p56 = scmp.eq.s32.totalorder %s18, 0
      %p57 = por %p55, %p56
      %s58 = ssub.s32 %s20, %s27
      %p59 = scmp.eq.s32.totalorder %s58, 0
      %s61 = sadd.s32 %s60, 1
      %s62 = scalar_select %p59, %s60, %s61
      %p65 = pneg %p59
      %p66 = scmp.eq.s32.totalorder %s12, 7
      %p67 = por %p65, %p66
      %p68 = scmp.ne.s32.totalorder %s60, %s63
      %p69 = scmp.eq.s32.totalorder %s12, 0
      %p70 = por %p68, %p69
      %p71 = scmp.ne.s32.totalorder %s60, %s63
      %p72 = scmp.eq.s32.totalorder %s17, 7
      %p73 = por %p71, %p72
      %p74 = scmp.ne.s32.totalorder %s63, %s64
      %p75 = scmp.eq.s32.totalorder %s17, 0
      %p76 = por %p74, %p75
      %p77 = scmp.ne.s32.totalorder %s63, %s64
      %p78 = scmp.eq.s32.totalorder %s18, 7
      %p79 = por %p77, %p78
      %p81 = scmp.ne.s32.totalorder %s64, %s80
      %p82 = scmp.eq.s32.totalorder %s18, 0
      %p83 = por %p81, %p82
      %s84 = ssub.s32 %s20, %s27
      %p85 = scmp.eq.s32.totalorder %s84, 0
      %s87 = sadd.s32 %s86, 1
      %s88 = scalar_select %p85, %s86, %s87
      %p91 = pneg %p85
      %p92 = scmp.eq.s32.totalorder %s12, 7
      %p93 = por %p91, %p92
      %p94 = scmp.ne.s32.totalorder %s86, %s89
      %p95 = scmp.eq.s32.totalorder %s12, 0
      %p96 = por %p94, %p95
      %p97 = scmp.ne.s32.totalorder %s86, %s89
      %p98 = scmp.eq.s32.totalorder %s17, 7
      %p99 = por %p97, %p98
      %p100 = scmp.ne.s32.totalorder %s89, %s90
      %p101 = scmp.eq.s32.totalorder %s17, 0
      %p102 = por %p100, %p101
      %p103 = scmp.ne.s32.totalorder %s89, %s90
      %p104 = scmp.eq.s32.totalorder %s18, 7
      %p105 = por %p103, %p104
      %p107 = scmp.ne.s32.totalorder %s90, %s106
      %p108 = scmp.eq.s32.totalorder %s18, 0
      %p109 = por %p107, %p108
      %s110 = ssub.s32 %s19, %s31
      %p111 = scmp.eq.s32.totalorder %s110, 0
      %s113 = sadd.s32 %s112, 1
      %s114 = scalar_select %p111, %s112, %s113
      %p117 = pneg %p111
      %p118 = scmp.eq.s32.totalorder %s12, 7
      %p119 = por %p117, %p118
      %p120 = scmp.ne.s32.totalorder %s112, %s115
      %p121 = scmp.eq.s32.totalorder %s12, 0
      %p122 = por %p120, %p121
      %p123 = scmp.ne.s32.totalorder %s112, %s115
      %p124 = scmp.eq.s32.totalorder %s17, 7
      %p125 = por %p123, %p124
      %p126 = scmp.ne.s32.totalorder %s115, %s116
      %p127 = scmp.eq.s32.totalorder %s17, 0
      %p128 = por %p126, %p127
      %p129 = scmp.ne.s32.totalorder %s115, %s116
      %p130 = scmp.eq.s32.totalorder %s18, 7
      %p131 = por %p129, %p130
      %p133 = scmp.ne.s32.totalorder %s116, %s132
      %p134 = scmp.eq.s32.totalorder %s18, 0
      %p135 = por %p133, %p134
      %p136 = scmp.le.s32.totalorder 1, %s12
      %p137 = scmp.lt.s32.totalorder %s12, 9
      %p138 = pnand %p136, %p137
      %p139 = pneg %p138
      // Predicated region
      $region9: #{_mlp_pallas_impl.1} parent=5 // pred_check
        _
      $region10: #{_mlp_pallas_impl.1} parent=5 // pred_check_branch
        %141 = sbr.rel (%p138) target = $region12
      $region11: #{_mlp_pallas_impl.1} parent=5 // pred_region
        %s142 = ssub.s32 %s12, 1
      $region12: #{_mlp_pallas_impl.1} parent=5 // pred_fallthru
        _
      %p143 = scmp.lt.s32.totalorder %s12, 8
      // Predicated region
      $region13: #{_mlp_pallas_impl.1} parent=5 // pred_check
        %p144 = pneg %p143
      $region14: #{_mlp_pallas_impl.1} parent=5 // pred_check_branch
        %146 = sbr.rel (%p144) target = $region16
      $region15: #{_mlp_pallas_impl.1} parent=5 // pred_region
        // Predicated region
        $region17: #{_mlp_pallas_impl.1} parent=15 // pred_check
          %p147 = pneg %p44
        $region18: #{_mlp_pallas_impl.1} parent=15 // pred_check_branch
          %149 = sbr.rel (%p147) target = $region20
        $region19: #{_mlp_pallas_impl.1} parent=15 // pred_region
          %p150 = scmp.lt.s32.totalorder %s19, 1
          %s151 = scalar_select %p150, %s19, 1
          %s152 = smul.addr %s151, 8
          %s153 = scalar_lea.vmem %s0, %s152
        $region20: #{_mlp_pallas_impl.1} parent=15 // pred_fallthru
          _
        // Predicated region
        $region21: #{_mlp_pallas_impl.1} parent=15 // pred_check
          %p154 = pneg %p70
        $region22: #{_mlp_pallas_impl.1} parent=15 // pred_check_branch
          %156 = sbr.rel (%p154) target = $region24
        $region23: #{_mlp_pallas_impl.1} parent=15 // pred_region
          %s157 = smul.u32 32, %s20
          %p158 = scmp.lt.s32.totalorder %s157, 127
          %s159 = scalar_select %p158, %s157, 127
          %s160 = smul.addr %s159, 8
          %s161 = scalar_lea.vmem %s1, %s160
          %s162 = smul.u32 32, %s20
        $region24: #{_mlp_pallas_impl.1} parent=15 // pred_fallthru
          _
        // Predicated region
        $region25: #{_mlp_pallas_impl.1} parent=15 // pred_check
          %p163 = pneg %p96
        $region26: #{_mlp_pallas_impl.1} parent=15 // pred_check_branch
          %165 = sbr.rel (%p163) target = $region28
        $region27: #{_mlp_pallas_impl.1} parent=15 // pred_region
          %s166 = smul.u32 16, %s20
          %p167 = scmp.lt.s32.totalorder %s166, 63
          %s168 = scalar_select %p167, %s166, 63
          %s169 = smul.addr %s168, 8
          %s170 = scalar_lea.vmem %s2, %s169
          %s171 = smul.u32 16, %s20
        $region28: #{_mlp_pallas_impl.1} parent=15 // pred_fallthru
          _
      $region16: #{_mlp_pallas_impl.1} parent=5 // pred_fallthru
        _
      %p172 = scmp.le.s32.totalorder 1, %s12
      %p173 = scmp.lt.s32.totalorder %s12, 9
      %p174 = pnand %p172, %p173
      %p175 = pneg %p174
      // Predicated region
      $region29: #{_mlp_pallas_impl.1} parent=5 // pred_check
        _
      $region30: #{_mlp_pallas_impl.1} parent=5 // pred_check_branch
        %177 = sbr.rel (%p174) target = $region32
      $region31: #{_mlp_pallas_impl.1} parent=5 // pred_region
        %s178 = ssub.s32 %s12, 1
        %p179 = scmp.lt.s32.totalorder %s21, 1
        %s180 = scalar_select %p179, %s21, 1
        %s181 = smul.addr %s180, 8
        %s182 = scalar_lea.vmem %s0, %s181
        %p183 = pneg %p50
        %p184 = pneg %p47
        %s185 = smul.u32 32, %s22
        %p186 = scmp.lt.s32.totalorder %s185, 127
        %s187 = scalar_select %p186, %s185, 127
        %s188 = smul.addr %s187, 8
        %s189 = scalar_lea.vmem %s1, %s188
        %p190 = pneg %p76
        %p191 = pneg %p73
        %s192 = smul.u32 16, %s22
        %p193 = scmp.lt.s32.totalorder %s192, 63
        %s194 = scalar_select %p193, %s192, 63
        %s195 = smul.addr %s194, 8
        %s196 = scalar_lea.vmem %s2, %s195
        %p197 = pneg %p102
        %p198 = pneg %p99
        %p199 = pneg %p128
        %p200 = pneg %p125
        %s201 = sand.u32 %s115, 1
        %s202 = scalar_lea.sflag [#allocation3], %s201
        %s203 = sand.u32 %s115, 1
        %s204 = smul.addr %s203, 8
        %s205 = scalar_lea.vmem [#allocation2], %s204
        %p206 = scmp.lt.s32.totalorder %s21, 1
        %s207 = scalar_select %p206, %s21, 1
        %s208 = smul.addr %s207, 8
        %s209 = scalar_lea.vmem %s0, %s208
        %s210 = smul.u32 32, %s22
        %p211 = scmp.lt.s32.totalorder %s210, 127
        %s212 = scalar_select %p211, %s210, 127
        %s213 = smul.addr %s212, 8
        %s214 = scalar_lea.vmem %s1, %s213
        %s215 = smul.u32 32, %s22
        %s216 = smul.u32 16, %s22
        %p217 = scmp.lt.s32.totalorder %s216, 63
        %s218 = scalar_select %p217, %s216, 63
        %s219 = smul.addr %s218, 8
        %s220 = scalar_lea.vmem %s2, %s219
        %s221 = smul.u32 16, %s22
        %p222 = scmp.eq.s32.totalorder %s22, 0
        // Predicated region
        $region33: #{_mlp_pallas_impl.1} parent=31 // pred_check
          %p223 = pneg %p222
        $region34: #{_mlp_pallas_impl.1} parent=31 // pred_check_branch
          %225 = sbr.rel (%p223) target = $region36
        $region35: #{_mlp_pallas_impl.1} parent=31 // pred_region
          %226 = vst [vmem:[%s205] sm:$0xff] 0.0
        $region36: #{_mlp_pallas_impl.1} parent=31 // pred_fallthru
          _
        %v227 = vld [vmem:[%s209] sm:$0xff]
        %v228 = vld [vmem:[%s214] sm:$0xff]
        %v229 = vld [vmem:[%s214 + $0x8] sm:$0xff]
        %v230 = vld [vmem:[%s214 + $0x10] sm:$0xff]
        %v231 = vld [vmem:[%s214 + $0x18] sm:$0xff]
        %v232 = vld [vmem:[%s214 + $0x20] sm:$0xff]
        %v233 = vld [vmem:[%s214 + $0x28] sm:$0xff]
        %v234 = vld [vmem:[%s214 + $0x30] sm:$0xff]
        %v235 = vld [vmem:[%s214 + $0x38] sm:$0xff]
        %v236 = vld [vmem:[%s214 + $0x40] sm:$0xff]
        %v237 = vld [vmem:[%s214 + $0x48] sm:$0xff]
        %v238 = vld [vmem:[%s214 + $0x50] sm:$0xff]
        %v239 = vld [vmem:[%s214 + $0x58] sm:$0xff]
        %v240 = vld [vmem:[%s214 + $0x60] sm:$0xff]
        %v241 = vld [vmem:[%s214 + $0x68] sm:$0xff]
        %v242 = vld [vmem:[%s214 + $0x70] sm:$0xff]
        %v243 = vld [vmem:[%s214 + $0x78] sm:$0xff]
        %v244 = vld [vmem:[%s214 + $0x80] sm:$0xff]
        %v245 = vld [vmem:[%s214 + $0x88] sm:$0xff]
        %v246 = vld [vmem:[%s214 + $0x90] sm:$0xff]
        %v247 = vld [vmem:[%s214 + $0x98] sm:$0xff]
        %v248 = vld [vmem:[%s214 + $0xa0] sm:$0xff]
        %v249 = vld [vmem:[%s214 + $0xa8] sm:$0xff]
        %v250 = vld [vmem:[%s214 + $0xb0] sm:$0xff]
        %v251 = vld [vmem:[%s214 + $0xb8] sm:$0xff]
        %v252 = vld [vmem:[%s214 + $0xc0] sm:$0xff]
        %v253 = vld [vmem:[%s214 + $0xc8] sm:$0xff]
        %v254 = vld [vmem:[%s214 + $0xd0] sm:$0xff]
        %v255 = vld [vmem:[%s214 + $0xd8] sm:$0xff]
        %v256 = vld [vmem:[%s214 + $0xe0] sm:$0xff]
        %v257 = vld [vmem:[%s214 + $0xe8] sm:$0xff]
        %v258 = vld [vmem:[%s214 + $0xf0] sm:$0xff]
        %v259 = vld [vmem:[%s214 + $0xf8] sm:$0xff]
        %260 = vmatprep.subr.mxu0 0.0
        %261 = vmatpush1.xpose.msra.mxu0 %v228
        %262 = vmatprep.subr.mxu0 0.0
        %263 = vmatpush1.xpose.msra.mxu0 %v229
        %264 = vmatprep.subr.mxu0 0.0
        %265 = vmatpush1.xpose.msra.mxu0 %v230
        %266 = vmatprep.subr.mxu0 0.0
        %267 = vmatpush1.xpose.msra.mxu0 %v231
        %268 = vmatprep.subr.mxu0 0.0
        %269 = vmatpush1.xpose.msra.mxu0 %v232
        %270 = vmatprep.subr.mxu0 0.0
        %271 = vmatpush1.xpose.msra.mxu0 %v233
        %272 = vmatprep.subr.mxu0 0.0
        %273 = vmatpush1.xpose.msra.mxu0 %v234
        %274 = vmatprep.subr.mxu0 0.0
        %275 = vmatpush1.xpose.msra.mxu0 %v235
        %276 = vmatprep.subr.mxu0 0.0
        %277 = vmatpush1.xpose.msra.mxu0 %v236
        %278 = vmatprep.subr.mxu0 0.0
        %279 = vmatpush1.xpose.msra.mxu0 %v237
        %280 = vmatprep.subr.mxu0 0.0
        %281 = vmatpush1.xpose.msra.mxu0 %v238
        %282 = vmatprep.subr.mxu0 0.0
        %283 = vmatpush1.xpose.msra.mxu0 %v239
        %284 = vmatprep.subr.mxu0 0.0
        %285 = vmatpush1.xpose.msra.mxu0 %v240
        %286 = vmatprep.subr.mxu0 0.0
        %287 = vmatpush1.xpose.msra.mxu0 %v241
        %288 = vmatprep.subr.mxu0 0.0
        %289 = vmatpush1.xpose.msra.mxu0 %v242
        %290 = vmatprep.subr.mxu0 0.0
        %291 = vmatpush1.xpose.msra.mxu0 %v243
        %292 = vmatprep.subr.mxu0 0.0
        %293 = vmatpush1.xpose.msra.mxu0 %v244
        %294 = vmatprep.subr.mxu0 0.0
        %295 = vmatpush1.xpose.msra.mxu0 %v245
        %296 = vmatprep.subr.mxu0 0.0
        %297 = vmatpush1.xpose.msra.mxu0 %v246
        %298 = vmatprep.subr.mxu0 0.0
        %299 = vmatpush1.xpose.msra.mxu0 %v247
        %300 = vmatprep.subr.mxu0 0.0
        %301 = vmatpush1.xpose.msra.mxu0 %v248
        %302 = vmatprep.subr.mxu0 0.0
        %303 = vmatpush1.xpose.msra.mxu0 %v249
        %304 = vmatprep.subr.mxu0 0.0
        %305 = vmatpush1.xpose.msra.mxu0 %v250
        %306 = vmatprep.subr.mxu0 0.0
        %307 = vmatpush1.xpose.msra.mxu0 %v251
        %308 = vmatprep.subr.mxu0 0.0
        %309 = vmatpush1.xpose.msra.mxu0 %v252
        %310 = vmatprep.subr.mxu0 0.0
        %311 = vmatpush1.xpose.msra.mxu0 %v253
        %312 = vmatprep.subr.mxu0 0.0
        %313 = vmatpush1.xpose.msra.mxu0 %v254
        %314 = vmatprep.subr.mxu0 0.0
        %315 = vmatpush1.xpose.msra.mxu0 %v255
        %316 = vmatprep.subr.mxu0 0.0
        %317 = vmatpush1.xpose.msra.mxu0 %v256
        %318 = vmatprep.subr.mxu0 0.0
        %319 = vmatpush1.xpose.msra.mxu0 %v257
        %320 = vmatprep.subr.mxu0 0.0
        %321 = vmatpush1.xpose.msra.mxu0 %v258
        %322 = vmatprep.subr.mxu0 0.0
        %323 = vmatpush1.xpose.msra.mxu0 %v259
        %324 = vmatprep.mubr.f32.mxu0 0.0
        %325 = vmatmul.mubr.f32.gmra.mrb[0].mxu0 %v227
        %v326 = vpop.f32.mrb[0].mxu0
        %v327 = vadd.f32 0.0, %v326
        %v328 = vpop.f32.mrb[0].mxu0
        %v329 = vadd.f32 0.0, %v328
        %330 = vdwg.mxu0
        %v331 = vxor.u32 %v327, 2147483648
        %v332 = vmul.f32 %v331, 1.442695
        %v333 = vpow.pop %v332
        %v334 = vadd.f32 %v333, 1.0
        %v335 = vrcp.pop %v334
        %v336 = vmul.f32 1.0, %v335
        %v337 = vmul.f32 %v327, %v336
        %v338 = vmul.f32 %v337, %v329
        %v339 = vld [vmem:[%s205] sm:$0xff]
        %v340 = vld [vmem:[%s220] sm:$0xff]
        %v341 = vld [vmem:[%s220 + $0x8] sm:$0xff]
        %v342 = vld [vmem:[%s220 + $0x10] sm:$0xff]
        %v343 = vld [vmem:[%s220 + $0x18] sm:$0xff]
        %v344 = vld [vmem:[%s220 + $0x20] sm:$0xff]
        %v345 = vld [vmem:[%s220 + $0x28] sm:$0xff]
        %v346 = vld [vmem:[%s220 + $0x30] sm:$0xff]
        %v347 = vld [vmem:[%s220 + $0x38] sm:$0xff]
        %v348 = vld [vmem:[%s220 + $0x40] sm:$0xff]
        %v349 = vld [vmem:[%s220 + $0x48] sm:$0xff]
        %v350 = vld [vmem:[%s220 + $0x50] sm:$0xff]
        %v351 = vld [vmem:[%s220 + $0x58] sm:$0xff]
        %v352 = vld [vmem:[%s220 + $0x60] sm:$0xff]
        %v353 = vld [vmem:[%s220 + $0x68] sm:$0xff]
        %v354 = vld [vmem:[%s220 + $0x70] sm:$0xff]
        %v355 = vld [vmem:[%s220 + $0x78] sm:$0xff]
        %356 = vmatprep.subr.mxu0 0.0
        %357 = vmatpush1.msra.mxu0 %v340
        %358 = vmatprep.subr.mxu0 0.0
        %359 = vmatpush1.msra.mxu0 %v341
        %360 = vmatprep.subr.mxu0 0.0
        %361 = vmatpush1.msra.mxu0 %v342
        %362 = vmatprep.subr.mxu0 0.0
        %363 = vmatpush1.msra.mxu0 %v343
        %364 = vmatprep.subr.mxu0 0.0
        %365 = vmatpush1.msra.mxu0 %v344
        %366 = vmatprep.subr.mxu0 0.0
        %367 = vmatpush1.msra.mxu0 %v345
        %368 = vmatprep.subr.mxu0 0.0
        %369 = vmatpush1.msra.mxu0 %v346
        %370 = vmatprep.subr.mxu0 0.0
        %371 = vmatpush1.msra.mxu0 %v347
        %372 = vmatprep.subr.mxu0 0.0
        %373 = vmatpush1.msra.mxu0 %v348
        %374 = vmatprep.subr.mxu0 0.0
        %375 = vmatpush1.msra.mxu0 %v349
        %376 = vmatprep.subr.mxu0 0.0
        %377 = vmatpush1.msra.mxu0 %v350
        %378 = vmatprep.subr.mxu0 0.0
        %379 = vmatpush1.msra.mxu0 %v351
        %380 = vmatprep.subr.mxu0 0.0
        %381 = vmatpush1.msra.mxu0 %v352
        %382 = vmatprep.subr.mxu0 0.0
        %383 = vmatpush1.msra.mxu0 %v353
        %384 = vmatprep.subr.mxu0 0.0
        %385 = vmatpush1.msra.mxu0 %v354
        %386 = vmatprep.subr.mxu0 0.0
        %387 = vmatpush1.msra.mxu0 %v355
        %388 = vmatprep.subr.mxu0 0.0
        %389 = vmatpush1.msra.mxu0 0.0
        %390 = vmatprep.subr.mxu0 0.0
        %391 = vmatpush1.msra.mxu0 0.0
        %392 = vmatprep.subr.mxu0 0.0
        %393 = vmatpush1.msra.mxu0 0.0
        %394 = vmatprep.subr.mxu0 0.0
        %395 = vmatpush1.msra.mxu0 0.0
        %396 = vmatprep.subr.mxu0 0.0
        %397 = vmatpush1.msra.mxu0 0.0
        %398 = vmatprep.subr.mxu0 0.0
        %399 = vmatpush1.msra.mxu0 0.0
        %400 = vmatprep.subr.mxu0 0.0
        %401 = vmatpush1.msra.mxu0 0.0
        %402 = vmatprep.subr.mxu0 0.0
        %403 = vmatpush1.msra.mxu0 0.0
        %404 = vmatprep.subr.mxu0 0.0
        %405 = vmatpush1.msra.mxu0 0.0
        %406 = vmatprep.subr.mxu0 0.0
        %407 = vmatpush1.msra.mxu0 0.0
        %408 = vmatprep.subr.mxu0 0.0
        %409 = vmatpush1.msra.mxu0 0.0
        %410 = vmatprep.subr.mxu0 0.0
        %411 = vmatpush1.msra.mxu0 0.0
        %412 = vmatprep.subr.mxu0 0.0
        %413 = vmatpush1.msra.mxu0 0.0
        %414 = vmatprep.subr.mxu0 0.0
        %415 = vmatpush1.msra.mxu0 0.0
        %416 = vmatprep.subr.mxu0 0.0
        %417 = vmatpush1.msra.mxu0 0.0
        %418 = vmatprep.subr.mxu0 0.0
        %419 = vmatpush1.msra.mxu0 0.0
        %420 = vmatprep.mubr.f32.mxu0 0.0
        %421 = vmatmul.mubr.f32.gmra.mrb[0].mxu0 %v338
        %v422 = vpop.f32.mrb[0].mxu0
        %v423 = vadd.f32 0.0, %v422
        %v424 = vpop.f32.mrb[0].mxu0
        %425 = vdwg.mxu0
        %v426 = vadd.f32 %v339, %v423
        %427 = vst [vmem:[%s205] sm:$0xff] %v426
        %s428 = sand.u32 %s115, 1
        %s429 = scalar_lea.sflag [#allocation3], %s428
        %s430 = sand.u32 %s115, 1
        %s431 = smul.addr %s430, 8
        %s432 = scalar_lea.vmem [#allocation2], %s431
        // Predicated region
        $region37: #{_mlp_pallas_impl.1} parent=31 // pred_check
          %p433 = pneg %p125
        $region38: #{_mlp_pallas_impl.1} parent=31 // pred_check_branch
          %435 = sbr.rel (%p433) target = $region40
        $region39: #{_mlp_pallas_impl.1} parent=31 // pred_region
          %s437 = ssub.s32 128, 128
          %438 = vsyncadd %s429, %s437
          %s439 = smul.addr %s21, 128
          %s440 = scalar_lea.hbm %s3, %s439
          %s442 = sshll.u32 %s432, 4
          %s443 = int_to_ptr.vmem [resolvable:$true] %s442
          %445 = dma.vmem_to_hbm [thread:$0]  %s443, 128, %s440, %s429
        $region40: #{_mlp_pallas_impl.1} parent=31 // pred_fallthru
          _
      $region32: #{_mlp_pallas_impl.1} parent=5 // pred_fallthru
        _
      %p446 = scmp.le.s32.totalorder 2, %s12
      // Predicated region
      $region41: #{_mlp_pallas_impl.1} parent=5 // pred_check
        %p447 = pneg %p446
      $region42: #{_mlp_pallas_impl.1} parent=5 // pred_check_branch
        %449 = sbr.rel (%p447) target = $region44
      $region43: #{_mlp_pallas_impl.1} parent=5 // pred_region
        %s450 = ssub.s32 %s12, 2
        // Predicated region
        $region45: #{_mlp_pallas_impl.1} parent=43 // pred_check
          %p451 = pneg %p131
        $region46: #{_mlp_pallas_impl.1} parent=43 // pred_check_branch
          %453 = sbr.rel (%p451) target = $region48
        $region47: #{_mlp_pallas_impl.1} parent=43 // pred_region
          %s454 = sand.u32 %s116, 1
          %s455 = scalar_lea.sflag [#allocation3], %s454
          %s456 = sand.u32 %s116, 1
          %s457 = smul.addr %s456, 8
          %s458 = scalar_lea.vmem [#allocation2], %s457
          %459 = dma.done %s455, 128
        $region48: #{_mlp_pallas_impl.1} parent=43 // pred_fallthru
          _
      $region44: #{_mlp_pallas_impl.1} parent=5 // pred_fallthru
        _
    $region6: #{_mlp_pallas_impl.1} parent=1 // loop_footer
      %s16 = sadd.s32 1, %s12
    $region7: #{_mlp_pallas_impl.1} parent=1 // loop_footer_branch
      %11 = sbr.rel target = $region3
    $region8: #{_mlp_pallas_impl.1} parent=1 // loop_exit
      _
    %460 = vsyncpa [#allocation3], 1
    %s461 = scalar_lea.sflag [#allocation3], 1
    %462 = vsyncpa %s461, 1

</llo_original>
